<compile_context>
chip_gen: v6e
topology: v6e:2x2x1
jax: 0.10.0
libtpu: 0.0.40
codegen_flags: <defaults>
</compile_context>

<pallas_src>
import jax
import jax.numpy as jnp
from jax.experimental import pallas as pl
from jax.experimental.pallas import tpu as pltpu


def _catavgmax_kernel(x_ref, out_ref):
    # x_ref:  (ROW_TILE, HW) block in VMEM
    # out_ref:(ROW_TILE, 2)  — column 0 = avg, column 1 = max
    x = x_ref[...].astype(jnp.float32)
    hw = x.shape[-1]
    avg = jnp.sum(x, axis=-1, keepdims=True) * (1.0 / hw)
    mx = jnp.max(x, axis=-1, keepdims=True)
    out_ref[...] = jnp.concatenate((avg, mx), axis=-1).astype(out_ref.dtype)


def _choose_row_tile(rows: int, hw: int, itemsize: int) -> int:
    """Pick the largest row tile that fits a portable VMEM budget.

    The input block is double-buffered by the Pallas pipeline, so the budget
    covers 2 x ROW_TILE x hw_padded x itemsize. 12 MiB keeps headroom inside
    the smallest default scoped-VMEM budget (v5e: 16 MiB) and is far below the
    32 MiB limit we request explicitly, so the same tile choice is safe on
    v5e / v6e / v7x.
    """
    hw_lanes = ((hw + 127) // 128) * 128          # lane padding in VMEM
    bytes_per_row = hw_lanes * itemsize
    budget = 12 * 1024 * 1024                      # double-buffered input budget
    max_rows = budget // (2 * bytes_per_row)
    max_rows = max(8, (max_rows // 8) * 8)         # sublane granularity
    rows_ceil = ((rows + 7) // 8) * 8
    # 1024-row cap: diminishing returns past ~512-1024 rows, and keeps the grid
    # with multiple steps on realistic inputs so both v7x TensorCores get work.
    return max(8, min(max_rows, 1024, rows_ceil))


def adaptive_catavgmax_pool2d(x: jax.Array, output_size=1) -> jax.Array:
    """Pallas equivalent of torch adaptive_catavgmax_pool2d with output_size=1.

    x: (B, C, H, W)  ->  (B, 2*C, 1, 1)
    """
    # TODO(synk): general output_size > 1 (windowed adaptive pooling) not implemented;
    # the common/default case (global pooling, output_size=1) is handled here.
    assert output_size == 1 or output_size == (1, 1), "only output_size=1 supported"

    B, C, H, W = x.shape
    rows = B * C
    hw = H * W

    x2d = x.reshape(rows, hw)  # no padding copy; partial last block is masked by Pallas

    row_tile = _choose_row_tile(rows, hw, x.dtype.itemsize)
    grid = (pl.cdiv(rows, row_tile),)

    out2d = pl.pallas_call(
        _catavgmax_kernel,
        out_shape=jax.ShapeDtypeStruct((rows, 2), x.dtype),
        grid=grid,
        in_specs=[pl.BlockSpec((row_tile, hw), lambda i: (i, 0))],
        out_specs=pl.BlockSpec((row_tile, 2), lambda i: (i, 0)),
        compiler_params=pltpu.CompilerParams(
            dimension_semantics=("parallel",),
            vmem_limit_bytes=32 * 1024 * 1024,
        ),
    )(x2d)

    x_avg = out2d[:, 0].reshape(B, C, 1, 1)
    x_max = out2d[:, 1].reshape(B, C, 1, 1)
    return jnp.concatenate((x_avg, x_max), axis=1)


class AdaptiveCatAvgMaxPool2d:
    """Concatenated average-max pooling layer (Pallas TPU)."""

    def __init__(self, output_size=1):
        self.output_size = output_size

    def __call__(self, x):
        return adaptive_catavgmax_pool2d(x, self.output_size)


def _reference(x):
    ref_avg = jnp.mean(x.astype(jnp.float32), axis=(2, 3), keepdims=True)
    ref_max = jnp.max(x.astype(jnp.float32), axis=(2, 3), keepdims=True)
    return jnp.concatenate((ref_avg, ref_max), axis=1).astype(x.dtype)


if __name__ == "__main__":
    key = jax.random.PRNGKey(0)
    mod = AdaptiveCatAvgMaxPool2d(output_size=1)

    # Case 1: small, tile-aligned shape.
    B, C, H, W = 2, 4, 16, 16
    x = jax.random.normal(key, (B, C, H, W), dtype=jnp.float32)
    out = jax.block_until_ready(mod(x))
    ref = _reference(x)
    assert out.shape == (B, 2 * C, 1, 1), out.shape
    assert jnp.allclose(out, ref, atol=1e-5, rtol=1e-5), "mismatch vs reference (case 1)"

    # Case 2: rows not a multiple of the tile, odd spatial size -> exercises the
    # masked partial last block (no wrapper-side padding copy).
    B2, C2, H2, W2 = 3, 5, 7, 9
    x2 = jax.random.normal(jax.random.PRNGKey(1), (B2, C2, H2, W2), dtype=jnp.float32)
    out2 = jax.block_until_ready(mod(x2))
    ref2 = _reference(x2)
    assert out2.shape == (B2, 2 * C2, 1, 1), out2.shape
    assert jnp.allclose(out2, ref2, atol=1e-5, rtol=1e-5), "mismatch vs reference (case 2)"

    print("KERNEL_OK")
</pallas_src>

<mosaic_0001>
module attributes {stable_mosaic.version = 11 : i64} {
  func.func @_catavgmax_kernel(%arg0: i32, %arg1: memref<8x256xf32, #tpu.memory_space<vmem>>, %arg2: memref<8x2xf32, #tpu.memory_space<vmem>>) attributes {dimension_semantics = [#tpu.dimension_semantics<parallel>], iteration_bounds = array<i64: 1>, scalar_prefetch = 0 : i64, scratch_operands = 0 : i64, tpu.core_type = #tpu.core_type<tc>, window_params = [{transform_indices = @transform_0, window_bounds = array<i64: 8, 256>}, {transform_indices = @transform_1, window_bounds = array<i64: 8, 2>}]} {
    %c0 = arith.constant 0 : index
    %c0_0 = arith.constant 0 : index
    %0 = vector.load %arg1[%c0, %c0_0] : memref<8x256xf32, #tpu.memory_space<vmem>>, vector<8x256xf32>
    %cst = arith.constant dense<0.000000e+00> : vector<8xf32>
    %1 = vector.multi_reduction <add>, %0, %cst [1] : vector<8x256xf32> to vector<8xf32>
    %2 = vector.shape_cast %1 : vector<8xf32> to vector<8x1xf32>
    %cst_1 = arith.constant 3.906250e-03 : f32
    %3 = vector.broadcast %cst_1 : f32 to vector<8x1xf32>
    %4 = arith.mulf %2, %3 : vector<8x1xf32>
    %cst_2 = arith.constant dense<0xFF800000> : vector<8xf32>
    %5 = vector.multi_reduction <maximumf>, %0, %cst_2 [1] : vector<8x256xf32> to vector<8xf32>
    %6 = vector.shape_cast %5 : vector<8xf32> to vector<8x1xf32>
    %7 = tpu.concatenate %4, %6 in 1 : vector<8x1xf32>, vector<8x1xf32> -> vector<8x2xf32>
    %c0_3 = arith.constant 0 : index
    %c0_4 = arith.constant 0 : index
    %8 = vector.load %arg2[%c0_3, %c0_4] : memref<8x2xf32, #tpu.memory_space<vmem>>, vector<8x2xf32>
    tpu.vector_store %arg2[%c0_3, %c0_4], %7 {strides = array<i32>} : memref<8x2xf32, #tpu.memory_space<vmem>>, vector<8x2xf32>,
    return
  }
  func.func @transform_0(%arg0: i32) -> (i32, i32) {
    %c0_i32 = arith.constant 0 : i32
    %c0_i32_0 = arith.constant 0 : i32
    return %arg0, %c0_i32 : i32, i32
  }
  func.func @transform_1(%arg0: i32) -> (i32, i32) {
    %c0_i32 = arith.constant 0 : i32
    %c0_i32_0 = arith.constant 0 : i32
    return %arg0, %c0_i32 : i32, i32
  }
}

</mosaic_0001>

<llo_original>
// kernel: tpu_custom_call.1
$region0: #{tpu_custom_call.1}
  #allocation0 [shape = 'u32[]', space=smem, size = 0x4, offset = 0x4, fixed_abs, tag = 'smem constant byte address 0x4 - core index']
  #allocation1 [shape = 'u32[144,128]{1,0:T(1,128)}', space=vmem, size = 0x12000, scoped, tag = 'internal scratch']
  %s0 = inlined_call_operand.hbm [shape: f32[8,256], index: 0, kind: input, shape index: {}]
  %s1 = inlined_call_operand.vmem [shape: f32[8,2], index: 1, kind: output, shape index: {}]
  %s2 = sld [smem:[#allocation0]]
  $region18: #{tpu_custom_call.1} parent=0
    _
  %s4 = ssub.s32 1, %s2
  %s5 = scalar_select 0, %s4, %s2
  $region1: #{tpu_custom_call.1} parent=0
    #allocation2 [shape = 'u8[8192]{0}', space=vmem, size = 0x2000, scoped, tag = 'input window, operand 0, single buffered']
    #allocation3 [shape = 's32[1]{0}', space=sflag, size = 0x4, scoped, tag = 'scoped memory for tpu_custom_call.1']
    %6 = vsyncpa [#allocation3], 0
    // Predicated region
    $region2: #{tpu_custom_call.1} parent=1 // pred_check
      _
    $region3: #{tpu_custom_call.1} parent=1 // pred_check_branch
      %8 = sbr.rel (0) target = $region5
    $region4: #{tpu_custom_call.1} parent=1 // pred_region
      %s10 = ssub.s32 256, 256
      %11 = vsyncadd [#allocation3], %s10
      %s13 = sshll.u32 [#allocation2], 4
      %s14 = int_to_ptr.vmem [resolvable:$true] %s13
      %16 = dma.hbm_to_vmem [thread:$0]  %s0, 256, %s14, [#allocation3]
    $region5: #{tpu_custom_call.1} parent=1 // pred_fallthru
      _
    // Predicated region
    $region6: #{tpu_custom_call.1} parent=1 // pred_check
      _
    $region7: #{tpu_custom_call.1} parent=1 // pred_check_branch
      %18 = sbr.rel (0) target = $region9
    $region8: #{tpu_custom_call.1} parent=1 // pred_region
      %19 = dma.done [#allocation3], 256
    $region9: #{tpu_custom_call.1} parent=1 // pred_fallthru
      _
    %v20 = vld [vmem:[#allocation2] sm:$0xff]
    %v21 = vld [vmem:[#allocation2 + $0x8] sm:$0xff]
    %v22 = vadd.f32 %v20, %v21
    %23 = vadd.xlane.f32.xlu0 %v22
    %v24 = vpop.xlane.xlu0 %23
    %v25 = vmul.f32 %v24, 0.00390625
    %v26 = vmax.f32 %v20, %v21
    %27 = vmax.xlane.f32.xlu0 %v26
    %v28 = vpop.xlane.xlu0 %27
    %vm29 = vcmask 7168
    %v30 = vsel %vm29, %v25, %v28
    %vm31 = vcmask 15360
    %32 = vst.msk [vmem:[%s1] sm:$0xff] %vm31, %v30
    // Predicated region
    $region10: #{tpu_custom_call.1} parent=1 // pred_check
      _
    $region11: #{tpu_custom_call.1} parent=1 // pred_check_branch
      %34 = sbr.rel (0) target = $region13
    $region12: #{tpu_custom_call.1} parent=1 // pred_region
      _
    $region13: #{tpu_custom_call.1} parent=1 // pred_fallthru
      _
    // Predicated region
    $region14: #{tpu_custom_call.1} parent=1 // pred_check
      _
    $region15: #{tpu_custom_call.1} parent=1 // pred_check_branch
      %36 = sbr.rel (0) target = $region17
    $region16: #{tpu_custom_call.1} parent=1 // pred_region
      _
    $region17: #{tpu_custom_call.1} parent=1 // pred_fallthru
      _
    %37 = vsyncpa [#allocation3], 1

</llo_original>
